<compile_context>
chip_gen: v7x
topology: tpu7x:2x2x1
jax: 0.10.0
libtpu: 0.0.40
codegen_flags: <defaults>
</compile_context>

<pallas_src>
import functools
import math

import jax
import jax.numpy as jnp
from jax.experimental import pallas as pl
from jax.experimental.pallas import tpu as pltpu


_LANE = 128
_TARGET_BLOCK_BYTES = 8 * 1024 * 1024      # combined (in + out) bytes per grid step
_VMEM_LIMIT_BYTES = 32 * 1024 * 1024       # double-buffered tiles stay well under this


def _sublane_multiple(dtype):
    itemsize = jnp.dtype(dtype).itemsize
    return {4: 8, 2: 16, 1: 32}.get(itemsize, 8)


def _copy_kernel(x_ref, o_ref):
    # Windowed-read path: the BlockSpec already selects the column window, so
    # the body is a pure identity copy (lane-dense loads and stores).
    o_ref[...] = x_ref[...]


def _slice_kernel(x_ref, o_ref, *, col_start, col_size):
    # General path: the input block spans the full feature width; slice on the
    # Ref so only the needed columns move VMEM -> vreg (no full-tile temp).
    o_ref[...] = x_ref[:, col_start:col_start + col_size]


def _row_tile(rows, bytes_per_row, sub_mult):
    """Row-tile size: sublane-aligned, ~_TARGET_BLOCK_BYTES per step, >=2 steps."""
    rt = max(1, _TARGET_BLOCK_BYTES // max(1, bytes_per_row))
    rt = max(sub_mult, (rt // sub_mult) * sub_mult)          # dtype-aware alignment
    # v7x has 2 TensorCores; keep the "parallel" row axis at >= 2 grid steps.
    if rows >= 2 * sub_mult:
        half = max(sub_mult, ((rows // 2) // sub_mult) * sub_mult)
        rt = min(rt, half)
    return min(rt, rows)


def part_layer(x, i, j):
    """Pallas implementation of Part_Layer.forward: x[:, :, i:j] (x.ndim >= 3)."""
    assert x.ndim >= 3, 'The Part Relation Works only for 3D inputs'
    i, j = int(i), int(j)
    d0, d1, d2 = x.shape[0], x.shape[1], x.shape[2]
    rest = x.shape[3:]

    # Mirror torch slicing semantics (clamped, empty slices allowed).
    i = max(0, min(i, d2))
    j = max(i, min(j, d2))
    out_d2 = j - i
    out_shape = (d0, d1, out_d2) + rest

    R = 1
    for r in rest:
        R *= r

    rows = d0 * d1
    DR = d2 * R                    # flattened feature width (dim 2 + trailing dims)
    outDR = out_d2 * R
    col_start = i * R

    # Fast path: narrow / empty windows or degenerate shapes are better served
    # by XLA's native slice (window-only traffic, no kernel or lane-padding
    # overhead, no masked vst.msk stores).
    if outDR == 0 or outDR < _LANE or rows == 0:
        return jax.lax.slice_in_dim(x, i, j, axis=2)

    itemsize = jnp.dtype(x.dtype).itemsize
    sub_mult = _sublane_multiple(x.dtype)

    x2 = x.reshape(rows, DR)       # free, layout-preserving reshape

    aligned = (col_start % _LANE == 0) and (outDR % _LANE == 0)
    if aligned:
        # Window-only HBM reads via a lane-windowed BlockSpec.  Column tiles
        # of width cw (a multiple of 128 that divides both the window start
        # and the window width) let the index_map address the window in whole
        # blocks.  Zero read amplification; identity-copy body.
        cw = math.gcd(col_start, outDR) if col_start else outDR
        # Keep column tiles modest so sublane-aligned row tiles stay VMEM-sized.
        max_cw = max(_LANE,
                     (_TARGET_BLOCK_BYTES // (2 * sub_mult * itemsize) // _LANE) * _LANE)
        if cw > max_cw:
            cw = _LANE             # still divides both (both are 128-aligned here)
        col_base = col_start // cw

        rt = _row_tile(rows, 2 * cw * itemsize, sub_mult)
        grid = (pl.cdiv(rows, rt), outDR // cw)

        out2 = pl.pallas_call(
            _copy_kernel,
            out_shape=jax.ShapeDtypeStruct((rows, outDR), x.dtype),
            grid_spec=pltpu.PrefetchScalarGridSpec(
                num_scalar_prefetch=0,
                grid=grid,
                in_specs=[pl.BlockSpec((rt, cw), lambda r, c: (r, col_base + c))],
                out_specs=pl.BlockSpec((rt, cw), lambda r, c: (r, c)),
            ),
            compiler_params=pltpu.CompilerParams(
                dimension_semantics=("parallel", "parallel"),
                vmem_limit_bytes=_VMEM_LIMIT_BYTES,
            ),
        )(x2)
    else:
        # General path: window start/width not 128-lane aligned -> read the
        # full feature width per row and slice on the Ref inside the kernel.
        # TODO(synk): window-only HBM reads for misaligned windows would need a
        # manual make_async_copy pipeline on a memory_space=pl.ANY input.
        rt = _row_tile(rows, (DR + outDR) * itemsize, sub_mult)
        grid = (pl.cdiv(rows, rt),)
        kernel = functools.partial(_slice_kernel,
                                   col_start=col_start, col_size=outDR)

        out2 = pl.pallas_call(
            kernel,
            out_shape=jax.ShapeDtypeStruct((rows, outDR), x.dtype),
            grid_spec=pltpu.PrefetchScalarGridSpec(
                num_scalar_prefetch=0,
                grid=grid,
                in_specs=[pl.BlockSpec((rt, DR), lambda r: (r, 0))],
                out_specs=pl.BlockSpec((rt, outDR), lambda r: (r, 0)),
            ),
            compiler_params=pltpu.CompilerParams(
                dimension_semantics=("parallel",),
                vmem_limit_bytes=_VMEM_LIMIT_BYTES,
            ),
        )(x2)

    return out2.reshape(out_shape)


def part_layer_ref(x, i, j):
    """Pure-JAX reference mirroring the PyTorch forward."""
    return x[:, :, i:j]


if __name__ == "__main__":
    key = jax.random.PRNGKey(0)
    k1, k2, k3 = jax.random.split(key, 3)

    # 1) 3-D f32, lane-aligned window -> windowed-BlockSpec Pallas path.
    x = jax.random.normal(k1, (2, 8, 512), dtype=jnp.float32)
    out = jax.block_until_ready(part_layer(x, 128, 384))
    assert out.shape == (2, 8, 256), out.shape
    assert jnp.allclose(out, part_layer_ref(x, 128, 384)), "mismatch (3D aligned)"

    # 2) 4-D f32, misaligned window -> general Pallas path (Ref-side slice).
    x4 = jax.random.normal(k2, (2, 4, 16, 16), dtype=jnp.float32)
    out4 = jax.block_until_ready(part_layer(x4, 4, 12))
    assert out4.shape == (2, 4, 8, 16), out4.shape
    assert jnp.allclose(out4, part_layer_ref(x4, 4, 12)), "mismatch (4D misaligned)"

    # 3) Narrow window -> lax.slice fast path.
    xn = jax.random.normal(k3, (2, 8, 32), dtype=jnp.float32)
    outn = jax.block_until_ready(part_layer(xn, 3, 29))
    assert outn.shape == (2, 8, 26), outn.shape
    assert jnp.allclose(outn, part_layer_ref(xn, 3, 29)), "mismatch (narrow window)"

    # 4) Empty slice (i == j), as PyTorch allows.
    oute = jax.block_until_ready(part_layer(xn, 5, 5))
    assert oute.shape == (2, 8, 0), oute.shape

    # 5) bf16 input (sublane packing multiple = 16), aligned path.
    xb = jax.random.normal(k1, (4, 8, 256), dtype=jnp.float32).astype(jnp.bfloat16)
    outb = jax.block_until_ready(part_layer(xb, 0, 128))
    assert outb.shape == (4, 8, 128), outb.shape
    assert jnp.array_equal(outb, part_layer_ref(xb, 0, 128)), "mismatch (bf16)"

    print("KERNEL_OK")
</pallas_src>

<mosaic_0001>
module attributes {stable_mosaic.version = 11 : i64} {
  func.func @_copy_kernel(%arg0: i32, %arg1: i32, %arg2: memref<8x128xf32, #tpu.memory_space<vmem>>, %arg3: memref<8x128xf32, #tpu.memory_space<vmem>>) attributes {dimension_semantics = [#tpu.dimension_semantics<parallel>, #tpu.dimension_semantics<parallel>], iteration_bounds = array<i64: 2, 2>, scalar_prefetch = 0 : i64, scratch_operands = 0 : i64, tpu.core_type = #tpu.core_type<tc>, window_params = [{transform_indices = @transform_0, window_bounds = array<i64: 8, 128>}, {transform_indices = @transform_1, window_bounds = array<i64: 8, 128>}]} {
    %c0 = arith.constant 0 : index
    %c0_0 = arith.constant 0 : index
    %0 = vector.load %arg2[%c0, %c0_0] : memref<8x128xf32, #tpu.memory_space<vmem>>, vector<8x128xf32>
    %c0_1 = arith.constant 0 : index
    %c0_2 = arith.constant 0 : index
    %1 = vector.load %arg3[%c0_1, %c0_2] : memref<8x128xf32, #tpu.memory_space<vmem>>, vector<8x128xf32>
    tpu.vector_store %arg3[%c0_1, %c0_2], %0 {strides = array<i32>} : memref<8x128xf32, #tpu.memory_space<vmem>>, vector<8x128xf32>,
    return
  }
  func.func @transform_0(%arg0: i32, %arg1: i32) -> (i32, i32) {
    %c1_i32 = arith.constant 1 : i32
    %0 = arith.addi %c1_i32, %arg1 : i32
    %c0_i32 = arith.constant 0 : i32
    return %arg0, %0 : i32, i32
  }
  func.func @transform_1(%arg0: i32, %arg1: i32) -> (i32, i32) {
    %c0_i32 = arith.constant 0 : i32
    return %arg0, %arg1 : i32, i32
  }
}

</mosaic_0001>

<llo_original>
// kernel: tpu_custom_call.1
$region0: #{tpu_custom_call.1}
  #allocation0 [shape = 'u32[]', space=smem, size = 0x4, offset = 0x4, fixed_abs, tag = 'smem constant byte address 0x4 - core index']
  #allocation1 [shape = 'u32[144,128]{1,0:T(1,128)}', space=vmem, size = 0x12000, scoped, tag = 'internal scratch']
  %s0 = inlined_call_operand.hbm [shape: f32[16,512], index: 0, kind: input, shape index: {}]
  %s1 = inlined_call_operand.hbm [shape: f32[16,256], index: 1, kind: output, shape index: {}]
  %s2 = sld [smem:[#allocation0]]
  $region41: #{tpu_custom_call.1} parent=0
    _
  %s4 = ssub.s32 1, %s2
  %s5 = scalar_select 0, %s4, %s2
  $region1: #{tpu_custom_call.1} parent=0
    #allocation2 [shape = 'u8[8192]{0}', space=vmem, size = 0x2000, scoped, tag = 'input window, operand 0']
    #allocation3 [shape = 's32[2]{0}', space=sflag, size = 0x8, scoped, tag = 'scoped memory for tpu_custom_call.1']
    #allocation4 [shape = 's32[2]{0}', space=sflag, size = 0x8, scoped, tag = 'scoped memory for tpu_custom_call.1']
    #allocation5 [shape = 'u8[8192]{0}', space=vmem, size = 0x2000, scoped, tag = 'output window, operand 0']
    %6 = vsyncpa [#allocation3], 0
    %s7 = scalar_lea.sflag [#allocation3], 1
    %8 = vsyncpa %s7, 0
    %9 = vsyncpa [#allocation4], 0
    %s10 = scalar_lea.sflag [#allocation4], 1
    %11 = vsyncpa %s10, 0
    loop: start=0, step=1, limit=6
    $region2: #{tpu_custom_call.1} parent=1 // loop_pre_header
      _
    $region3: #{tpu_custom_call.1} parent=1 // loop_header
      %s13 = sphi 0, %s17
      %p14 = scmp.ge.s32.totalorder %s13, 6
      %s20 = sphi 0, %s32
      %s21 = sphi 0, %s28
      %s22 = sphi 0, %s20
      %s23 = sphi 0, %s21
      %s24 = sphi 0, %s22
      %s25 = sphi 0, %s23
      %s39 = sphi 0, %s41
      %s42 = sphi 0, %s39
      %s43 = sphi 0, %s42
      %s59 = sphi 0, %s43
      %s67 = sphi 0, %s69
      %s70 = sphi 0, %s67
      %s71 = sphi 0, %s70
      %s87 = sphi 0, %s71
    $region4: #{tpu_custom_call.1} parent=1 // loop_header_branch
      %16 = sbr.rel (%p14) target = $region8
    $region5: #{tpu_custom_call.1} parent=1 // loop_body
      %s18 = ssub.s32 %s13, 1
      %s19 = ssub.s32 %s13, 2
      %s26 = sadd.s32 1, %s21
      %p27 = scmp.ge.s32.totalorder %s26, 2
      %s28 = scalar_select %p27, 0, %s26
      %s29 = sadd.s32 1, %s20
      %s30 = scalar_select %p27, %s29, %s20
      %p31 = scmp.ge.s32.totalorder %s30, 2
      %s32 = scalar_select %p31, 0, %s30
      %s33 = sadd.s32 %s21, 1
      %s34 = sadd.s32 %s28, 1
      %s35 = ssub.s32 %s20, %s32
      %s36 = ssub.s32 %s33, %s34
      %s37 = sor.u32 %s35, %s36
      %p38 = scmp.eq.s32.totalorder %s37, 0
      %s40 = sadd.s32 %s39, 1
      %s41 = scalar_select %p38, %s39, %s40
      %p44 = pneg %p38
      %p45 = scmp.eq.s32.totalorder %s13, 3
      %p46 = por %p44, %p45
      %p47 = scmp.ne.s32.totalorder %s39, %s42
      %p48 = scmp.eq.s32.totalorder %s13, 0
      %p49 = por %p47, %p48
      %p50 = scmp.ne.s32.totalorder %s39, %s42
      %p51 = scmp.eq.s32.totalorder %s18, 3
      %p52 = por %p50, %p51
      %p53 = scmp.ne.s32.totalorder %s42, %s43
      %p54 = scmp.eq.s32.totalorder %s18, 0
      %p55 = por %p53, %p54
      %p56 = scmp.ne.s32.totalorder %s42, %s43
      %p57 = scmp.eq.s32.totalorder %s19, 3
      %p58 = por %p56, %p57
      %p60 = scmp.ne.s32.totalorder %s43, %s59
      %p61 = scmp.eq.s32.totalorder %s19, 0
      %p62 = por %p60, %p61
      %s63 = ssub.s32 %s20, %s32
      %s64 = ssub.s32 %s21, %s28
      %s65 = sor.u32 %s63, %s64
      %p66 = scmp.eq.s32.totalorder %s65, 0
      %s68 = sadd.s32 %s67, 1
      %s69 = scalar_select %p66, %s67, %s68
      %p72 = pneg %p66
      %p73 = scmp.eq.s32.totalorder %s13, 3
      %p74 = por %p72, %p73
      %p75 = scmp.ne.s32.totalorder %s67, %s70
      %p76 = scmp.eq.s32.totalorder %s13, 0
      %p77 = por %p75, %p76
      %p78 = scmp.ne.s32.totalorder %s67, %s70
      %p79 = scmp.eq.s32.totalorder %s18, 3
      %p80 = por %p78, %p79
      %p81 = scmp.ne.s32.totalorder %s70, %s71
      %p82 = scmp.eq.s32.totalorder %s18, 0
      %p83 = por %p81, %p82
      %p84 = scmp.ne.s32.totalorder %s70, %s71
      %p85 = scmp.eq.s32.totalorder %s19, 3
      %p86 = por %p84, %p85
      %p88 = scmp.ne.s32.totalorder %s71, %s87
      %p89 = scmp.eq.s32.totalorder %s19, 0
      %p90 = por %p88, %p89
      %p91 = scmp.le.s32.totalorder 1, %s13
      %p92 = scmp.lt.s32.totalorder %s13, 5
      %p93 = pnand %p91, %p92
      %p94 = pneg %p93
      // Predicated region
      $region9: #{tpu_custom_call.1} parent=5 // pred_check
        _
      $region10: #{tpu_custom_call.1} parent=5 // pred_check_branch
        %96 = sbr.rel (%p93) target = $region12
      $region11: #{tpu_custom_call.1} parent=5 // pred_region
        %s97 = ssub.s32 %s13, 1
      $region12: #{tpu_custom_call.1} parent=5 // pred_fallthru
        _
      %p98 = scmp.lt.s32.totalorder %s13, 4
      // Predicated region
      $region13: #{tpu_custom_call.1} parent=5 // pred_check
        %p99 = pneg %p98
      $region14: #{tpu_custom_call.1} parent=5 // pred_check_branch
        %101 = sbr.rel (%p99) target = $region16
      $region15: #{tpu_custom_call.1} parent=5 // pred_region
        // Predicated region
        $region17: #{tpu_custom_call.1} parent=15 // pred_check
          %p102 = pneg %p49
        $region18: #{tpu_custom_call.1} parent=15 // pred_check_branch
          %104 = sbr.rel (%p102) target = $region20
        $region19: #{tpu_custom_call.1} parent=15 // pred_region
          %s105 = sand.u32 %s39, 1
          %s106 = scalar_lea.sflag [#allocation3], %s105
          %s107 = sand.u32 %s39, 1
          %s108 = smul.addr %s107, 8
          %s109 = scalar_lea.vmem [#allocation2], %s108
          %s110 = sadd.s32 %s21, 1
          %s112 = ssub.s32 128, 128
          %113 = vsyncadd %s106, %s112
          %s114 = smul.addr %s20, 4
          %s115 = sadd.s32 %s110, %s114
          %s116 = smul.addr %s115, 128
          %s117 = scalar_lea.hbm %s0, %s116
          %s119 = sshll.u32 %s109, 4
          %s120 = int_to_ptr.vmem [resolvable:$true] %s119
          %122 = dma.hbm_to_vmem [thread:$0]  %s117, 128, %s120, %s106
        $region20: #{tpu_custom_call.1} parent=15 // pred_fallthru
          _
      $region16: #{tpu_custom_call.1} parent=5 // pred_fallthru
        _
      %p123 = scmp.le.s32.totalorder 1, %s13
      %p124 = scmp.lt.s32.totalorder %s13, 5
      %p125 = pnand %p123, %p124
      %p126 = pneg %p125
      // Predicated region
      $region21: #{tpu_custom_call.1} parent=5 // pred_check
        _
      $region22: #{tpu_custom_call.1} parent=5 // pred_check_branch
        %128 = sbr.rel (%p125) target = $region24
      $region23: #{tpu_custom_call.1} parent=5 // pred_region
        %s129 = ssub.s32 %s13, 1
        %s130 = sand.u32 %s42, 1
        %s131 = scalar_lea.sflag [#allocation3], %s130
        %s132 = sand.u32 %s42, 1
        %s133 = smul.addr %s132, 8
        %s134 = scalar_lea.vmem [#allocation2], %s133
        // Predicated region
        $region25: #{tpu_custom_call.1} parent=23 // pred_check
          %p135 = pneg %p55
        $region26: #{tpu_custom_call.1} parent=23 // pred_check_branch
          %137 = sbr.rel (%p135) target = $region28
        $region27: #{tpu_custom_call.1} parent=23 // pred_region
          %138 = dma.done %s131, 128
        $region28: #{tpu_custom_call.1} parent=23 // pred_fallthru
          _
        %s139 = sand.u32 %s42, 1
        %s140 = scalar_lea.sflag [#allocation3], %s139
        %s141 = sand.u32 %s42, 1
        %s142 = smul.addr %s141, 8
        %s143 = scalar_lea.vmem [#allocation2], %s142
        %p144 = pneg %p55
        %p145 = pneg %p52
        %p146 = pneg %p83
        %p147 = pneg %p80
        %s148 = sand.u32 %s70, 1
        %s149 = scalar_lea.sflag [#allocation4], %s148
        %s150 = sand.u32 %s70, 1
        %s151 = smul.addr %s150, 8
        %s152 = scalar_lea.vmem [#allocation5], %s151
        %s153 = sadd.s32 %s23, 1
        %v154 = vld [vmem:[%s134] sm:$0xff]
        %155 = vst [vmem:[%s152] sm:$0xff] %v154
        %s156 = sand.u32 %s70, 1
        %s157 = scalar_lea.sflag [#allocation4], %s156
        %s158 = sand.u32 %s70, 1
        %s159 = smul.addr %s158, 8
        %s160 = scalar_lea.vmem [#allocation5], %s159
        // Predicated region
        $region29: #{tpu_custom_call.1} parent=23 // pred_check
          %p161 = pneg %p80
        $region30: #{tpu_custom_call.1} parent=23 // pred_check_branch
          %163 = sbr.rel (%p161) target = $region32
        $region31: #{tpu_custom_call.1} parent=23 // pred_region
          %s165 = ssub.s32 128, 128
          %166 = vsyncadd %s157, %s165
          %s167 = smul.addr %s22, 2
          %s168 = sadd.s32 %s23, %s167
          %s169 = smul.addr %s168, 128
          %s170 = scalar_lea.hbm %s1, %s169
          %s172 = sshll.u32 %s160, 4
          %s173 = int_to_ptr.vmem [resolvable:$true] %s172
          %175 = dma.vmem_to_hbm [thread:$0]  %s173, 128, %s170, %s157
        $region32: #{tpu_custom_call.1} parent=23 // pred_fallthru
          _
      $region24: #{tpu_custom_call.1} parent=5 // pred_fallthru
        _
      %p176 = scmp.le.s32.totalorder 2, %s13
      // Predicated region
      $region33: #{tpu_custom_call.1} parent=5 // pred_check
        %p177 = pneg %p176
      $region34: #{tpu_custom_call.1} parent=5 // pred_check_branch
        %179 = sbr.rel (%p177) target = $region36
      $region35: #{tpu_custom_call.1} parent=5 // pred_region
        %s180 = ssub.s32 %s13, 2
        // Predicated region
        $region37: #{tpu_custom_call.1} parent=35 // pred_check
          %p181 = pneg %p86
        $region38: #{tpu_custom_call.1} parent=35 // pred_check_branch
          %183 = sbr.rel (%p181) target = $region40
        $region39: #{tpu_custom_call.1} parent=35 // pred_region
          %s184 = sand.u32 %s71, 1
          %s185 = scalar_lea.sflag [#allocation4], %s184
          %s186 = sand.u32 %s71, 1
          %s187 = smul.addr %s186, 8
          %s188 = scalar_lea.vmem [#allocation5], %s187
          %189 = dma.done %s185, 128
        $region40: #{tpu_custom_call.1} parent=35 // pred_fallthru
          _
      $region36: #{tpu_custom_call.1} parent=5 // pred_fallthru
        _
    $region6: #{tpu_custom_call.1} parent=1 // loop_footer
      %s17 = sadd.s32 1, %s13
    $region7: #{tpu_custom_call.1} parent=1 // loop_footer_branch
      %12 = sbr.rel target = $region3
    $region8: #{tpu_custom_call.1} parent=1 // loop_exit
      _
    %190 = vsyncpa [#allocation3], 1
    %s191 = scalar_lea.sflag [#allocation3], 1
    %192 = vsyncpa %s191, 1
    %193 = vsyncpa [#allocation4], 1
    %s194 = scalar_lea.sflag [#allocation4], 1
    %195 = vsyncpa %s194, 1

</llo_original>
